<compile_context>
chip_gen: v5e
topology: v5e:2x2
jax: 0.10.0
libtpu: 0.0.40
codegen_flags: <defaults>
</compile_context>

<pallas_src>
import functools

import jax
import jax.numpy as jnp
from jax.experimental import pallas as pl
from jax.experimental.pallas import tpu as pltpu


def _round_up(x, m):
    return ((x + m - 1) // m) * m


def _critic_kernel(obs_ref, w1_ref, b1_ref, w2_ref, b2_ref, w3r_ref, b3_ref,
                   out_ref, *, compute_dtype):
    # obs_ref : (TILE_B, obs_dim)  f32 (HBM dtype; cast here on the VPU)
    # w1_ref  : (obs_dim, HP)      compute dtype       HP = hidden padded to 128
    # b1_ref  : (1, HP)            f32
    # w2_ref  : (HP, HP)           compute dtype
    # b2_ref  : (1, HP)            f32
    # w3r_ref : (1, HP)            f32 (layer-3 weight as a row; used on VPU/XLU)
    # b3_ref  : (1,)               f32 scalar in SMEM
    # out_ref : (TILE_B, 1)        f32 column output (masked stores on last block)
    x = obs_ref[...]
    if compute_dtype != jnp.float32:
        x = x.astype(compute_dtype)

    # layer 1 + ReLU (MXU matmul, f32 accumulation; bias/ReLU in f32)
    h1 = jnp.dot(x, w1_ref[...], preferred_element_type=jnp.float32)
    h1 = jnp.maximum(h1 + b1_ref[...], 0.0)                      # (TILE_B, HP) f32

    # layer 2 + ReLU
    h1c = h1 if compute_dtype == jnp.float32 else h1.astype(compute_dtype)
    h2 = jnp.dot(h1c, w2_ref[...], preferred_element_type=jnp.float32)
    h2 = jnp.maximum(h2 + b2_ref[...], 0.0)                      # (TILE_B, HP) f32

    # layer 3 (64 -> 1): broadcast multiply (VPU) + lane reduce (XLU).
    # No transpose, no degenerate M=1/N=1 matmul; padded lanes are exactly 0.
    out_col = jnp.sum(h2 * w3r_ref[...], axis=-1, keepdims=True)  # (TILE_B, 1) f32
    out_ref[...] = (out_col + b3_ref[0]).astype(out_ref.dtype)


def _mlp_reference(obs, w1, b1, w2, b2, w3, b3, compute_dtype=jnp.float32):
    """Plain-XLA reference / small-batch path (mirrors the kernel's dtype policy:
    layers 1-2 matmuls in compute_dtype with f32 accumulate, layer 3 in f32)."""
    f32 = jnp.float32
    x = obs.astype(compute_dtype)
    h1 = jnp.maximum(
        jnp.dot(x, w1.astype(compute_dtype), preferred_element_type=f32) + b1, 0.0)
    h2 = jnp.maximum(
        jnp.dot(h1.astype(compute_dtype), w2.astype(compute_dtype),
                preferred_element_type=f32) + b2, 0.0)
    return jnp.dot(h2, w3.astype(f32), preferred_element_type=f32) + b3


@functools.partial(
    jax.jit, static_argnames=("tile_b", "min_pallas_batch", "compute_dtype"))
def critic_forward(obs, w1, b1, w2, b2, w3, b3, *,
                   tile_b=8192, min_pallas_batch=64,
                   compute_dtype=jnp.float32):
    """Fused Critic forward. obs: (B, obs_dim); weights stored [in, out]."""
    B, obs_dim = obs.shape
    H = w1.shape[1]

    # Very small batches: pallas_call overhead dominates -> plain XLA.
    if B < min_pallas_batch:
        return _mlp_reference(obs, w1, b1, w2, b2, w3, b3,
                              compute_dtype=compute_dtype)

    HP = _round_up(H, 128)                      # pad hidden to full lane width
    cdt = compute_dtype
    cdt_size = jnp.dtype(cdt).itemsize

    # ---- pack / pad parameters (tiny, VMEM-resident via constant index_maps) --
    w1_p = jnp.pad(w1, ((0, 0), (0, HP - H))).astype(cdt)                  # (obs_dim, HP)
    b1_p = jnp.pad(b1.reshape(1, H), ((0, 0), (0, HP - H))).astype(jnp.float32)
    w2_p = jnp.pad(w2, ((0, HP - H), (0, HP - H))).astype(cdt)             # (HP, HP)
    b2_p = jnp.pad(b2.reshape(1, H), ((0, 0), (0, HP - H))).astype(jnp.float32)
    w3r_p = jnp.pad(w3[:, 0].reshape(1, H), ((0, 0), (0, HP - H))).astype(jnp.float32)
    b3_p = b3.reshape(1).astype(jnp.float32)                               # SMEM scalar

    # ---- batch tile: as big as the VMEM budget allows, but keep >= 2 tiles ----
    # Budget against v7x's 32 MiB default scoped VMEM (64 MiB physical), with
    # headroom: double-buffered f32 obs tiles + f32 intermediates + output.
    vmem_budget = 24 * 1024 * 1024
    weight_bytes = (obs_dim * HP + HP * HP) * cdt_size + 4 * HP * 4
    per_row_bytes = 2 * obs_dim * 4 + 4 * HP * 4 + 2 * 4
    vmem_tile_cap = max(
        128, ((vmem_budget - weight_bytes) // per_row_bytes) // 128 * 128)

    tile = min(_round_up(tile_b, 128), vmem_tile_cap)
    tile = min(tile, _round_up(pl.cdiv(B, 2), 128))   # v7x: keep both TCs busy
    tile = max(tile, 128)
    # Ragged last block: OOB input reads are harmless (their output rows are
    # masked on store); no jnp.pad / no slicing needed.
    num_tiles = pl.cdiv(B, tile)

    cost = pl.CostEstimate(
        flops=2 * B * (obs_dim * HP + HP * HP + HP),
        transcendentals=0,
        bytes_accessed=B * obs_dim * 4 + B * 4 + int(weight_bytes),
    )

    kernel = functools.partial(_critic_kernel, compute_dtype=cdt)

    out = pl.pallas_call(
        kernel,
        grid=(num_tiles,),
        out_shape=jax.ShapeDtypeStruct((B, 1), jnp.float32),
        in_specs=[
            pl.BlockSpec((tile, obs_dim), lambda i: (i, 0)),       # streamed obs tile (f32)
            pl.BlockSpec((obs_dim, HP), lambda i: (0, 0)),         # w1 (resident)
            pl.BlockSpec((1, HP), lambda i: (0, 0)),               # b1
            pl.BlockSpec((HP, HP), lambda i: (0, 0)),              # w2
            pl.BlockSpec((1, HP), lambda i: (0, 0)),               # b2
            pl.BlockSpec((1, HP), lambda i: (0, 0)),               # w3 row (f32)
            pl.BlockSpec(memory_space=pltpu.MemorySpace.SMEM),     # b3 scalar
        ],
        out_specs=pl.BlockSpec((tile, 1), lambda i: (i, 0)),       # (B, 1) column
        compiler_params=pltpu.CompilerParams(
            dimension_semantics=("parallel",),
            vmem_limit_bytes=32 * 1024 * 1024,
        ),
        cost_estimate=cost,
    )(obs, w1_p, b1_p, w2_p, b2_p, w3r_p, b3_p)

    return out


def init_critic_params(key, obs_dim, hidden=64):
    """Deterministic init mimicking PyTorch nn.Linear (uniform +/- 1/sqrt(fan_in)).
    Weights stored as [in_features, out_features] (transpose of PyTorch layout)."""
    ks = jax.random.split(key, 6)

    def linear(kw, kb, fan_in, fan_out):
        bound = 1.0 / float(fan_in) ** 0.5
        w = jax.random.uniform(kw, (fan_in, fan_out), jnp.float32, -bound, bound)
        b = jax.random.uniform(kb, (fan_out,), jnp.float32, -bound, bound)
        return w, b

    w1, b1 = linear(ks[0], ks[1], obs_dim, hidden)
    w2, b2 = linear(ks[2], ks[3], hidden, hidden)
    w3, b3 = linear(ks[4], ks[5], hidden, 1)
    return w1, b1, w2, b2, w3, b3


if __name__ == "__main__":
    key = jax.random.PRNGKey(0)
    k_obs, k_params = jax.random.split(key)

    batch, obs_dim = 300, 32     # 300 not a tile multiple -> exercises ragged last block
    obs = jax.random.normal(k_obs, (batch, obs_dim), jnp.float32)
    params = init_critic_params(k_params, obs_dim)

    # f32 path (default; matches the PyTorch module's dtype).
    out_f32 = jax.block_until_ready(critic_forward(obs, *params))
    ref_f32 = _mlp_reference(obs, *params, compute_dtype=jnp.float32)
    assert out_f32.shape == (batch, 1), out_f32.shape
    assert jnp.allclose(out_f32, ref_f32, atol=2e-2, rtol=2e-2), (
        f"f32 max abs err {jnp.max(jnp.abs(out_f32 - ref_f32))}")

    # bf16 compute path (obs cast inside the kernel) vs matched-precision reference.
    out_bf16 = jax.block_until_ready(
        critic_forward(obs, *params, compute_dtype=jnp.bfloat16))
    ref_bf16 = _mlp_reference(obs, *params, compute_dtype=jnp.bfloat16)
    assert out_bf16.shape == (batch, 1), out_bf16.shape
    assert jnp.allclose(out_bf16, ref_bf16, atol=2e-2, rtol=2e-2), (
        f"bf16 max abs err {jnp.max(jnp.abs(out_bf16 - ref_bf16))}")

    # small-batch XLA fallback path
    out_small = jax.block_until_ready(critic_forward(obs[:16], *params))
    assert out_small.shape == (16, 1), out_small.shape

    print("KERNEL_OK")
</pallas_src>

<mosaic_0001>
module attributes {stable_mosaic.version = 11 : i64} {
  func.func @_critic_kernel(%arg0: i32, %arg1: memref<256x32xf32, #tpu.memory_space<vmem>>, %arg2: memref<32x128xf32, #tpu.memory_space<vmem>>, %arg3: memref<1x128xf32, #tpu.memory_space<vmem>>, %arg4: memref<128x128xf32, #tpu.memory_space<vmem>>, %arg5: memref<1x128xf32, #tpu.memory_space<vmem>>, %arg6: memref<1x128xf32, #tpu.memory_space<vmem>>, %arg7: memref<1xf32, #tpu.memory_space<smem>>, %arg8: memref<256x1xf32, #tpu.memory_space<vmem>>) attributes {dimension_semantics = [#tpu.dimension_semantics<parallel>], iteration_bounds = array<i64: 2>, scalar_prefetch = 0 : i64, scratch_operands = 0 : i64, tpu.core_type = #tpu.core_type<tc>, window_params = [{transform_indices = @transform_0, window_bounds = array<i64: 256, 32>}, {pipeline_mode = #tpu.pipeline_mode<synchronous>, transform_indices = @transform_1, window_bounds = array<i64: 32, 128>}, {pipeline_mode = #tpu.pipeline_mode<synchronous>, transform_indices = @transform_2, window_bounds = array<i64: 1, 128>}, {pipeline_mode = #tpu.pipeline_mode<synchronous>, transform_indices = @transform_3, window_bounds = array<i64: 128, 128>}, {pipeline_mode = #tpu.pipeline_mode<synchronous>, transform_indices = @transform_4, window_bounds = array<i64: 1, 128>}, {pipeline_mode = #tpu.pipeline_mode<synchronous>, transform_indices = @transform_5, window_bounds = array<i64: 1, 128>}, {transform_indices = @transform_6, window_bounds = array<i64: 1>}, {transform_indices = @transform_7, window_bounds = array<i64: 256, 1>}]} {
    %c0 = arith.constant 0 : index
    %c0_0 = arith.constant 0 : index
    %0 = vector.load %arg1[%c0, %c0_0] : memref<256x32xf32, #tpu.memory_space<vmem>>, vector<256x32xf32>
    %c0_1 = arith.constant 0 : index
    %c0_2 = arith.constant 0 : index
    %1 = vector.load %arg2[%c0_1, %c0_2] : memref<32x128xf32, #tpu.memory_space<vmem>>, vector<32x128xf32>
    %cst = arith.constant dense<0.000000e+00> : vector<256x128xf32>
    %2 = tpu.matmul %0, %1, %cst {dimension_numbers = #tpu.dot_dimension_numbers<[1], [0], [0], [1], [0, 0, 1, 1], [], []>} : vector<256x32xf32>, vector<32x128xf32>, vector<256x128xf32> -> vector<256x128xf32>
    %c0_3 = arith.constant 0 : index
    %c0_4 = arith.constant 0 : index
    %3 = vector.load %arg3[%c0_3, %c0_4] : memref<1x128xf32, #tpu.memory_space<vmem>>, vector<1x128xf32>
    %4 = vector.broadcast %3 : vector<1x128xf32> to vector<256x128xf32>
    %5 = arith.addf %2, %4 : vector<256x128xf32>
    %cst_5 = arith.constant 0.000000e+00 : f32
    %6 = vector.broadcast %cst_5 : f32 to vector<256x128xf32>
    %7 = arith.maximumf %5, %6 : vector<256x128xf32>
    %c0_6 = arith.constant 0 : index
    %c0_7 = arith.constant 0 : index
    %8 = vector.load %arg4[%c0_6, %c0_7] : memref<128x128xf32, #tpu.memory_space<vmem>>, vector<128x128xf32>
    %cst_8 = arith.constant dense<0.000000e+00> : vector<256x128xf32>
    %9 = tpu.matmul %7, %8, %cst_8 {dimension_numbers = #tpu.dot_dimension_numbers<[1], [0], [0], [1], [0, 0, 1, 1], [], []>} : vector<256x128xf32>, vector<128x128xf32>, vector<256x128xf32> -> vector<256x128xf32>
    %c0_9 = arith.constant 0 : index
    %c0_10 = arith.constant 0 : index
    %10 = vector.load %arg5[%c0_9, %c0_10] : memref<1x128xf32, #tpu.memory_space<vmem>>, vector<1x128xf32>
    %11 = vector.broadcast %10 : vector<1x128xf32> to vector<256x128xf32>
    %12 = arith.addf %9, %11 : vector<256x128xf32>
    %cst_11 = arith.constant 0.000000e+00 : f32
    %13 = vector.broadcast %cst_11 : f32 to vector<256x128xf32>
    %14 = arith.maximumf %12, %13 : vector<256x128xf32>
    %c0_12 = arith.constant 0 : index
    %c0_13 = arith.constant 0 : index
    %15 = vector.load %arg6[%c0_12, %c0_13] : memref<1x128xf32, #tpu.memory_space<vmem>>, vector<1x128xf32>
    %16 = vector.broadcast %15 : vector<1x128xf32> to vector<256x128xf32>
    %17 = arith.mulf %14, %16 : vector<256x128xf32>
    %cst_14 = arith.constant dense<0.000000e+00> : vector<256xf32>
    %18 = vector.multi_reduction <add>, %17, %cst_14 [1] : vector<256x128xf32> to vector<256xf32>
    %19 = vector.shape_cast %18 : vector<256xf32> to vector<256x1xf32>
    %c0_15 = arith.constant 0 : index
    %20 = memref.load %arg7[%c0_15] : memref<1xf32, #tpu.memory_space<smem>>
    %21 = vector.broadcast %20 : f32 to vector<256x1xf32>
    %22 = arith.addf %19, %21 : vector<256x1xf32>
    %c0_16 = arith.constant 0 : index
    %c0_17 = arith.constant 0 : index
    %23 = vector.load %arg8[%c0_16, %c0_17] : memref<256x1xf32, #tpu.memory_space<vmem>>, vector<256x1xf32>
    tpu.vector_store %arg8[%c0_16, %c0_17], %22 {strides = array<i32>} : memref<256x1xf32, #tpu.memory_space<vmem>>, vector<256x1xf32>,
    return
  }
  func.func @transform_0(%arg0: i32) -> (i32, i32) {
    %c0_i32 = arith.constant 0 : i32
    %c0_i32_0 = arith.constant 0 : i32
    return %arg0, %c0_i32 : i32, i32
  }
  func.func @transform_1(%arg0: i32) -> (i32, i32) {
    %c0_i32 = arith.constant 0 : i32
    %c0_i32_0 = arith.constant 0 : i32
    %c0_i32_1 = arith.constant 0 : i32
    return %c0_i32, %c0_i32_0 : i32, i32
  }
  func.func @transform_2(%arg0: i32) -> (i32, i32) {
    %c0_i32 = arith.constant 0 : i32
    %c0_i32_0 = arith.constant 0 : i32
    %c0_i32_1 = arith.constant 0 : i32
    return %c0_i32, %c0_i32_0 : i32, i32
  }
  func.func @transform_3(%arg0: i32) -> (i32, i32) {
    %c0_i32 = arith.constant 0 : i32
    %c0_i32_0 = arith.constant 0 : i32
    %c0_i32_1 = arith.constant 0 : i32
    return %c0_i32, %c0_i32_0 : i32, i32
  }
  func.func @transform_4(%arg0: i32) -> (i32, i32) {
    %c0_i32 = arith.constant 0 : i32
    %c0_i32_0 = arith.constant 0 : i32
    %c0_i32_1 = arith.constant 0 : i32
    return %c0_i32, %c0_i32_0 : i32, i32
  }
  func.func @transform_5(%arg0: i32) -> (i32, i32) {
    %c0_i32 = arith.constant 0 : i32
    %c0_i32_0 = arith.constant 0 : i32
    %c0_i32_1 = arith.constant 0 : i32
    return %c0_i32, %c0_i32_0 : i32, i32
  }
  func.func @transform_6(%arg0: i32) -> i32 {
    %c0_i32 = arith.constant 0 : i32
    %c0_i32_0 = arith.constant 0 : i32
    return %c0_i32 : i32
  }
  func.func @transform_7(%arg0: i32) -> (i32, i32) {
    %c0_i32 = arith.constant 0 : i32
    %c0_i32_0 = arith.constant 0 : i32
    return %arg0, %c0_i32 : i32, i32
  }
}

</mosaic_0001>

<llo_original>
// kernel: critic_forward.1
$region0: #{critic_forward.1}
  #allocation0 [shape = 'u32[]', space=smem, size = 0x4, offset = 0x4, fixed_abs, tag = 'smem constant byte address 0x4 - core index']
  #allocation1 [shape = 'u32[72,128]{1,0:T(1,128)}', space=vmem, size = 0x9000, scoped, tag = 'internal scratch']
  #allocation2 [shape = 'f32[1]{0:T(128)S(6)}', space=smem, size = 0x200, scoped, tag = 'scoped memory for critic_forward.1']
  %s0 = inlined_call_operand.vmem [shape: f32[300,32], index: 0, kind: input, shape index: {}]
  %s1 = inlined_call_operand.vmem [shape: f32[32,128], index: 1, kind: input, shape index: {}]
  %s2 = inlined_call_operand.vmem [shape: f32[1,128], index: 2, kind: input, shape index: {}]
  %s3 = inlined_call_operand.vmem [shape: f32[128,128], index: 3, kind: input, shape index: {}]
  %s4 = inlined_call_operand.vmem [shape: f32[1,128], index: 4, kind: input, shape index: {}]
  %s5 = inlined_call_operand.vmem [shape: f32[1,128], index: 5, kind: input, shape index: {}]
  %s6 = inlined_call_operand.<no memory space> [shape: f32[1], index: 6, kind: input, shape index: {}]
  %s7 = inlined_call_operand.vmem [shape: f32[300,1], index: 7, kind: output, shape index: {}]
  %s8 = sld [smem:[#allocation0]]
  $region109: #{critic_forward.1} parent=0
    _
  %s10 = ssub.s32 1, %s8
  %s11 = scalar_select 0, %s10, %s8
  %12 = sst [smem:[#allocation2]] %s6
  $region1: #{critic_forward.1} parent=0
    #allocation3 [shape = 'u8[262144]{0}', space=vmem, size = 0x40000, scoped, tag = 'output window, operand 0']
    loop: start=0, step=1, limit=4
    $region2: #{critic_forward.1} parent=1 // loop_pre_header
      _
    $region3: #{critic_forward.1} parent=1 // loop_header
      %s14 = sphi 0, %s18
      %p15 = scmp.ge.s32.totalorder %s14, 4
      %s24 = sphi 0, %s26
      %s27 = sphi 0, %s24
      %s28 = sphi 0, %s27
      %s44 = sphi 0, %s28
      %s48 = sphi 0, %s48
      %s50 = sphi 0, %s48
      %s51 = sphi 0, %s50
      %s65 = sphi 0, %s51
      %s69 = sphi 0, %s69
      %s71 = sphi 0, %s69
      %s72 = sphi 0, %s71
      %s86 = sphi 0, %s72
      %s90 = sphi 0, %s90
      %s92 = sphi 0, %s90
      %s93 = sphi 0, %s92
      %s107 = sphi 0, %s93
      %s111 = sphi 0, %s111
      %s113 = sphi 0, %s111
      %s114 = sphi 0, %s113
      %s128 = sphi 0, %s114
      %s132 = sphi 0, %s132
      %s134 = sphi 0, %s132
      %s135 = sphi 0, %s134
      %s149 = sphi 0, %s135
      %s153 = sphi 0, %s153
      %s155 = sphi 0, %s153
      %s156 = sphi 0, %s155
      %s170 = sphi 0, %s156
      %s176 = sphi 0, %s178
      %s179 = sphi 0, %s176
      %s180 = sphi 0, %s179
      %s196 = sphi 0, %s180
    $region4: #{critic_forward.1} parent=1 // loop_header_branch
      %17 = sbr.rel (%p15) target = $region8
    $region5: #{critic_forward.1} parent=1 // loop_body
      %s19 = ssub.s32 %s14, 1
      %s20 = ssub.s32 %s14, 2
      %s21 = sadd.s32 %s14, 1
      %s22 = ssub.s32 %s14, %s21
      %p23 = scmp.eq.s32.totalorder %s22, 0
      %s25 = sadd.s32 %s24, 1
      %s26 = scalar_select %p23, %s24, %s25
      %p29 = pneg %p23
      %p30 = scmp.eq.s32.totalorder %s14, 1
      %p31 = por %p29, %p30
      %p32 = scmp.ne.s32.totalorder %s24, %s27
      %p33 = scmp.eq.s32.totalorder %s14, 0
      %p34 = por %p32, %p33
      %p35 = scmp.ne.s32.totalorder %s24, %s27
      %p36 = scmp.eq.s32.totalorder %s19, 1
      %p37 = por %p35, %p36
      %p38 = scmp.ne.s32.totalorder %s27, %s28
      %p39 = scmp.eq.s32.totalorder %s19, 0
      %p40 = por %p38, %p39
      %p41 = scmp.ne.s32.totalorder %s27, %s28
      %p42 = scmp.eq.s32.totalorder %s20, 1
      %p43 = por %p41, %p42
      %p45 = scmp.ne.s32.totalorder %s28, %s44
      %p46 = scmp.eq.s32.totalorder %s20, 0
      %p47 = por %p45, %p46
      %s49 = sadd.s32 %s48, 1
      %p52 = scmp.eq.s32.totalorder %s14, 1
      %p53 = scmp.ne.s32.totalorder %s48, %s50
      %p54 = scmp.eq.s32.totalorder %s14, 0
      %p55 = por %p53, %p54
      %p56 = scmp.ne.s32.totalorder %s48, %s50
      %p57 = scmp.eq.s32.totalorder %s19, 1
      %p58 = por %p56, %p57
      %p59 = scmp.ne.s32.totalorder %s50, %s51
      %p60 = scmp.eq.s32.totalorder %s19, 0
      %p61 = por %p59, %p60
      %p62 = scmp.ne.s32.totalorder %s50, %s51
      %p63 = scmp.eq.s32.totalorder %s20, 1
      %p64 = por %p62, %p63
      %p66 = scmp.ne.s32.totalorder %s51, %s65
      %p67 = scmp.eq.s32.totalorder %s20, 0
      %p68 = por %p66, %p67
      %s70 = sadd.s32 %s69, 1
      %p73 = scmp.eq.s32.totalorder %s14, 1
      %p74 = scmp.ne.s32.totalorder %s69, %s71
      %p75 = scmp.eq.s32.totalorder %s14, 0
      %p76 = por %p74, %p75
      %p77 = scmp.ne.s32.totalorder %s69, %s71
      %p78 = scmp.eq.s32.totalorder %s19, 1
      %p79 = por %p77, %p78
      %p80 = scmp.ne.s32.totalorder %s71, %s72
      %p81 = scmp.eq.s32.totalorder %s19, 0
      %p82 = por %p80, %p81
      %p83 = scmp.ne.s32.totalorder %s71, %s72
      %p84 = scmp.eq.s32.totalorder %s20, 1
      %p85 = por %p83, %p84
      %p87 = scmp.ne.s32.totalorder %s72, %s86
      %p88 = scmp.eq.s32.totalorder %s20, 0
      %p89 = por %p87, %p88
      %s91 = sadd.s32 %s90, 1
      %p94 = scmp.eq.s32.totalorder %s14, 1
      %p95 = scmp.ne.s32.totalorder %s90, %s92
      %p96 = scmp.eq.s32.totalorder %s14, 0
      %p97 = por %p95, %p96
      %p98 = scmp.ne.s32.totalorder %s90, %s92
      %p99 = scmp.eq.s32.totalorder %s19, 1
      %p100 = por %p98, %p99
      %p101 = scmp.ne.s32.totalorder %s92, %s93
      %p102 = scmp.eq.s32.totalorder %s19, 0
      %p103 = por %p101, %p102
      %p104 = scmp.ne.s32.totalorder %s92, %s93
      %p105 = scmp.eq.s32.totalorder %s20, 1
      %p106 = por %p104, %p105
      %p108 = scmp.ne.s32.totalorder %s93, %s107
      %p109 = scmp.eq.s32.totalorder %s20, 0
      %p110 = por %p108, %p109
      %s112 = sadd.s32 %s111, 1
      %p115 = scmp.eq.s32.totalorder %s14, 1
      %p116 = scmp.ne.s32.totalorder %s111, %s113
      %p117 = scmp.eq.s32.totalorder %s14, 0
      %p118 = por %p116, %p117
      %p119 = scmp.ne.s32.totalorder %s111, %s113
      %p120 = scmp.eq.s32.totalorder %s19, 1
      %p121 = por %p119, %p120
      %p122 = scmp.ne.s32.totalorder %s113, %s114
      %p123 = scmp.eq.s32.totalorder %s19, 0
      %p124 = por %p122, %p123
      %p125 = scmp.ne.s32.totalorder %s113, %s114
      %p126 = scmp.eq.s32.totalorder %s20, 1
      %p127 = por %p125, %p126
      %p129 = scmp.ne.s32.totalorder %s114, %s128
      %p130 = scmp.eq.s32.totalorder %s20, 0
      %p131 = por %p129, %p130
      %s133 = sadd.s32 %s132, 1
      %p136 = scmp.eq.s32.totalorder %s14, 1
      %p137 = scmp.ne.s32.totalorder %s132, %s134
      %p138 = scmp.eq.s32.totalorder %s14, 0
      %p139 = por %p137, %p138
      %p140 = scmp.ne.s32.totalorder %s132, %s134
      %p141 = scmp.eq.s32.totalorder %s19, 1
      %p142 = por %p140, %p141
      %p143 = scmp.ne.s32.totalorder %s134, %s135
      %p144 = scmp.eq.s32.totalorder %s19, 0
      %p145 = por %p143, %p144
      %p146 = scmp.ne.s32.totalorder %s134, %s135
      %p147 = scmp.eq.s32.totalorder %s20, 1
      %p148 = por %p146, %p147
      %p150 = scmp.ne.s32.totalorder %s135, %s149
      %p151 = scmp.eq.s32.totalorder %s20, 0
      %p152 = por %p150, %p151
      %s154 = sadd.s32 %s153, 1
      %p157 = scmp.eq.s32.totalorder %s14, 1
      %p158 = scmp.ne.s32.totalorder %s153, %s155
      %p159 = scmp.eq.s32.totalorder %s14, 0
      %p160 = por %p158, %p159
      %p161 = scmp.ne.s32.totalorder %s153, %s155
      %p162 = scmp.eq.s32.totalorder %s19, 1
      %p163 = por %p161, %p162
      %p164 = scmp.ne.s32.totalorder %s155, %s156
      %p165 = scmp.eq.s32.totalorder %s19, 0
      %p166 = por %p164, %p165
      %p167 = scmp.ne.s32.totalorder %s155, %s156
      %p168 = scmp.eq.s32.totalorder %s20, 1
      %p169 = por %p167, %p168
      %p171 = scmp.ne.s32.totalorder %s156, %s170
      %p172 = scmp.eq.s32.totalorder %s20, 0
      %p173 = por %p171, %p172
      %s174 = ssub.s32 %s14, %s21
      %p175 = scmp.eq.s32.totalorder %s174, 0
      %s177 = sadd.s32 %s176, 1
      %s178 = scalar_select %p175, %s176, %s177
      %p181 = pneg %p175
      %p182 = scmp.eq.s32.totalorder %s14, 1
      %p183 = por %p181, %p182
      %p184 = scmp.ne.s32.totalorder %s176, %s179
      %p185 = scmp.eq.s32.totalorder %s14, 0
      %p186 = por %p184, %p185
      %p187 = scmp.ne.s32.totalorder %s176, %s179
      %p188 = scmp.eq.s32.totalorder %s19, 1
      %p189 = por %p187, %p188
      %p190 = scmp.ne.s32.totalorder %s179, %s180
      %p191 = scmp.eq.s32.totalorder %s19, 0
      %p192 = por %p190, %p191
      %p193 = scmp.ne.s32.totalorder %s179, %s180
      %p194 = scmp.eq.s32.totalorder %s20, 1
      %p195 = por %p193, %p194
      %p197 = scmp.ne.s32.totalorder %s180, %s196
      %p198 = scmp.eq.s32.totalorder %s20, 0
      %p199 = por %p197, %p198
      %p200 = scmp.le.s32.totalorder 1, %s14
      %p201 = scmp.lt.s32.totalorder %s14, 3
      %p202 = pnand %p200, %p201
      %p203 = pneg %p202
      // Predicated region
      $region9: #{critic_forward.1} parent=5 // pred_check
        _
      $region10: #{critic_forward.1} parent=5 // pred_check_branch
        %205 = sbr.rel (%p202) target = $region12
      $region11: #{critic_forward.1} parent=5 // pred_region
        %s206 = ssub.s32 %s14, 1
        // Predicated region
        $region13: #{critic_forward.1} parent=11 // pred_check
          %p207 = pneg %p61
        $region14: #{critic_forward.1} parent=11 // pred_check_branch
          %209 = sbr.rel (%p207) target = $region16
        $region15: #{critic_forward.1} parent=11 // pred_region
          _
        $region16: #{critic_forward.1} parent=11 // pred_fallthru
          _
        // Predicated region
        $region17: #{critic_forward.1} parent=11 // pred_check
          %p210 = pneg %p82
        $region18: #{critic_forward.1} parent=11 // pred_check_branch
          %212 = sbr.rel (%p210) target = $region20
        $region19: #{critic_forward.1} parent=11 // pred_region
          _
        $region20: #{critic_forward.1} parent=11 // pred_fallthru
          _
        // Predicated region
        $region21: #{critic_forward.1} parent=11 // pred_check
          %p213 = pneg %p103
        $region22: #{critic_forward.1} parent=11 // pred_check_branch
          %215 = sbr.rel (%p213) target = $region24
        $region23: #{critic_forward.1} parent=11 // pred_region
          _
        $region24: #{critic_forward.1} parent=11 // pred_fallthru
          _
        // Predicated region
        $region25: #{critic_forward.1} parent=11 // pred_check
          %p216 = pneg %p124
        $region26: #{critic_forward.1} parent=11 // pred_check_branch
          %218 = sbr.rel (%p216) target = $region28
        $region27: #{critic_forward.1} parent=11 // pred_region
          _
        $region28: #{critic_forward.1} parent=11 // pred_fallthru
          _
        // Predicated region
        $region29: #{critic_forward.1} parent=11 // pred_check
          %p219 = pneg %p145
        $region30: #{critic_forward.1} parent=11 // pred_check_branch
          %221 = sbr.rel (%p219) target = $region32
        $region31: #{critic_forward.1} parent=11 // pred_region
          _
        $region32: #{critic_forward.1} parent=11 // pred_fallthru
          _
        // Predicated region
        $region33: #{critic_forward.1} parent=11 // pred_check
          %p222 = pneg %p166
        $region34: #{critic_forward.1} parent=11 // pred_check_branch
          %224 = sbr.rel (%p222) target = $region36
        $region35: #{critic_forward.1} parent=11 // pred_region
          _
        $region36: #{critic_forward.1} parent=11 // pred_fallthru
          _
      $region12: #{critic_forward.1} parent=5 // pred_fallthru
        _
      %p225 = scmp.lt.s32.totalorder %s14, 2
      // Predicated region
      $region37: #{critic_forward.1} parent=5 // pred_check
        %p226 = pneg %p225
      $region38: #{critic_forward.1} parent=5 // pred_check_branch
        %228 = sbr.rel (%p226) target = $region40
      $region39: #{critic_forward.1} parent=5 // pred_region
        // Predicated region
        $region41: #{critic_forward.1} parent=39 // pred_check
          %p229 = pneg %p34
        $region42: #{critic_forward.1} parent=39 // pred_check_branch
          %231 = sbr.rel (%p229) target = $region44
        $region43: #{critic_forward.1} parent=39 // pred_region
          %s232 = smul.u32 32, %s14
          %s233 = ssub.s32 38, %s232
          %p234 = scmp.lt.s32.totalorder %s233, 32
          %s235 = scalar_select %p234, %s233, 32
          %s236 = smul.u32 8, %s235
          %p237 = scmp.lt.s32.totalorder %s232, 37
          %s238 = scalar_select %p237, %s232, 37
          %s239 = smul.addr %s238, 8
          %s240 = scalar_lea.vmem %s0, %s239
          %s241 = smul.u32 32, %s14
          %s242 = ssub.s32 38, %s241
          %p243 = scmp.lt.s32.totalorder %s242, 32
          %s244 = scalar_select %p243, %s242, 32
          %s245 = smul.u32 8, %s244
        $region44: #{critic_forward.1} parent=39 // pred_fallthru
          _
      $region40: #{critic_forward.1} parent=5 // pred_fallthru
        _
      %p246 = scmp.le.s32.totalorder 1, %s14
      %p247 = scmp.lt.s32.totalorder %s14, 3
      %p248 = pnand %p246, %p247
      %p249 = pneg %p248
      // Predicated region
      $region45: #{critic_forward.1} parent=5 // pred_check
        _
      $region46: #{critic_forward.1} parent=5 // pred_check_branch
        %251 = sbr.rel (%p248) target = $region48
      $region47: #{critic_forward.1} parent=5 // pred_region
        %s252 = ssub.s32 %s14, 1
        %s253 = smul.u32 32, %s19
        %s254 = ssub.s32 38, %s253
        %p255 = scmp.lt.s32.totalorder %s254, 32
        %s256 = scalar_select %p255, %s254, 32
        %s257 = smul.u32 8, %s256
        %p258 = scmp.lt.s32.totalorder %s253, 37
        %s259 = scalar_select %p258, %s253, 37
        %s260 = smul.addr %s259, 8
        %s261 = scalar_lea.vmem %s0, %s260
        %p262 = pneg %p40
        %p263 = pneg %p37
        %p264 = pneg %p61
        %p265 = pneg %p58
        %p266 = pneg %p82
        %p267 = pneg %p79
        %p268 = pneg %p103
        %p269 = pneg %p100
        %p270 = pneg %p124
        %p271 = pneg %p121
        %p272 = pneg %p145
        %p273 = pneg %p142
        %p274 = pneg %p166
        %p275 = pneg %p163
        %p276 = pneg %p192
        %p277 = pneg %p189
        %s278 = sand.u32 %s179, 1
        %s279 = sand.u32 %s179, 1
        %s280 = smul.addr %s279, 256
        %s281 = scalar_lea.vmem [#allocation3], %s280
        %s282 = smul.u32 32, %s19
        %s283 = ssub.s32 38, %s282
        %p284 = scmp.lt.s32.totalorder %s283, 32
        %s285 = scalar_select %p284, %s283, 32
        %s286 = smul.u32 8, %s285
        %p287 = scmp.lt.s32.totalorder %s282, 37
        %s288 = scalar_select %p287, %s282, 37
        %s289 = smul.addr %s288, 8
        %s290 = scalar_lea.vmem %s0, %s289
        %s291 = smul.u32 32, %s19
        %s292 = ssub.s32 38, %s291
        %p293 = scmp.lt.s32.totalorder %s292, 32
        %s294 = scalar_select %p293, %s292, 32
        %s295 = smul.u32 8, %s294
        %s296 = smul.u32 32, %s19
        %s297 = ssub.s32 38, %s296
        %p298 = scmp.lt.s32.totalorder %s297, 32
        %s299 = scalar_select %p298, %s297, 32
        %s300 = smul.u32 8, %s299
        %v301 = vld [vmem:[%s290] sm:$0xff]
        %v302 = vld [vmem:[%s290 + $0x8] sm:$0xff]
        %v303 = vld [vmem:[%s290 + $0x10] sm:$0xff]
        %v304 = vld [vmem:[%s290 + $0x18] sm:$0xff]
        %v305 = vld [vmem:[%s290 + $0x20] sm:$0xff]
        %v306 = vld [vmem:[%s290 + $0x28] sm:$0xff]
        %v307 = vld [vmem:[%s290 + $0x30] sm:$0xff]
        %v308 = vld [vmem:[%s290 + $0x38] sm:$0xff]
        %v309 = vld [vmem:[%s290 + $0x40] sm:$0xff]
        %v310 = vld [vmem:[%s290 + $0x48] sm:$0xff]
        %v311 = vld [vmem:[%s290 + $0x50] sm:$0xff]
        %v312 = vld [vmem:[%s290 + $0x58] sm:$0xff]
        %v313 = vld [vmem:[%s290 + $0x60] sm:$0xff]
        %v314 = vld [vmem:[%s290 + $0x68] sm:$0xff]
        %v315 = vld [vmem:[%s290 + $0x70] sm:$0xff]
        %v316 = vld [vmem:[%s290 + $0x78] sm:$0xff]
        %v317 = vld [vmem:[%s290 + $0x80] sm:$0xff]
        %v318 = vld [vmem:[%s290 + $0x88] sm:$0xff]
        %v319 = vld [vmem:[%s290 + $0x90] sm:$0xff]
        %v320 = vld [vmem:[%s290 + $0x98] sm:$0xff]
        %v321 = vld [vmem:[%s290 + $0xa0] sm:$0xff]
        %v322 = vld [vmem:[%s290 + $0xa8] sm:$0xff]
        %v323 = vld [vmem:[%s290 + $0xb0] sm:$0xff]
        %v324 = vld [vmem:[%s290 + $0xb8] sm:$0xff]
        %v325 = vld [vmem:[%s290 + $0xc0] sm:$0xff]
        %v326 = vld [vmem:[%s290 + $0xc8] sm:$0xff]
        %v327 = vld [vmem:[%s290 + $0xd0] sm:$0xff]
        %v328 = vld [vmem:[%s290 + $0xd8] sm:$0xff]
        %v329 = vld [vmem:[%s290 + $0xe0] sm:$0xff]
        %v330 = vld [vmem:[%s290 + $0xe8] sm:$0xff]
        %v331 = vld [vmem:[%s290 + $0xf0] sm:$0xff]
        %v332 = vld [vmem:[%s290 + $0xf8] sm:$0xff]
        %v333 = vld [vmem:[%s1] sm:$0xff]
        %v334 = vld [vmem:[%s1 + $0x8] sm:$0xff]
        %v335 = vld [vmem:[%s1 + $0x10] sm:$0xff]
        %v336 = vld [vmem:[%s1 + $0x18] sm:$0xff]
        %v337 = vld [vmem:[%s2] sm:$0x1]
        %v339 = vperm.slane %v337, 0
        %vm341 = vcmask 261120
        %v343 = vsel %vm341, %v301, 0
        %v346 = vsel %vm341, %v302, 0
        %v349 = vsel %vm341, %v303, 0
        %v352 = vsel %vm341, %v304, 0
        %v355 = vsel %vm341, %v305, 0
        %v358 = vsel %vm341, %v306, 0
        %v361 = vsel %vm341, %v307, 0
        %v364 = vsel %vm341, %v308, 0
        %v367 = vsel %vm341, %v309, 0
        %v370 = vsel %vm341, %v310, 0
        %v373 = vsel %vm341, %v311, 0
        %v376 = vsel %vm341, %v312, 0
        %v379 = vsel %vm341, %v313, 0
        %v382 = vsel %vm341, %v314, 0
        %v385 = vsel %vm341, %v315, 0
        %v388 = vsel %vm341, %v316, 0
        %v391 = vsel %vm341, %v317, 0
        %v394 = vsel %vm341, %v318, 0
        %v397 = vsel %vm341, %v319, 0
        %v400 = vsel %vm341, %v320, 0
        %v403 = vsel %vm341, %v321, 0
        %v406 = vsel %vm341, %v322, 0
        %v409 = vsel %vm341, %v323, 0
        %v412 = vsel %vm341, %v324, 0
        %v415 = vsel %vm341, %v325, 0
        %v418 = vsel %vm341, %v326, 0
        %v421 = vsel %vm341, %v327, 0
        %v424 = vsel %vm341, %v328, 0
        %v427 = vsel %vm341, %v329, 0
        %v430 = vsel %vm341, %v330, 0
        %v433 = vsel %vm341, %v331, 0
        %v436 = vsel %vm341, %v332, 0
        %438 = vmatpush.msra.mxu0 0.0
        %439 = vmatpush.msra.mxu0 0.0
        %440 = vmatpush.msra.mxu0 0.0
        %441 = vmatpush.msra.mxu0 0.0
        %442 = vmatpush.msra.mxu0 0.0
        %443 = vmatpush.msra.mxu0 0.0
        %444 = vmatpush.msra.mxu0 0.0
        %445 = vmatpush.msra.mxu0 0.0
        %446 = vmatpush.msra.mxu0 0.0
        %447 = vmatpush.msra.mxu0 0.0
        %448 = vmatpush.msra.mxu0 0.0
        %449 = vmatpush.msra.mxu0 0.0
        %450 = vmatpush.msra.mxu0 %v336
        %451 = vmatpush.msra.mxu0 %v335
        %452 = vmatpush.msra.mxu0 %v334
        %453 = vmatpush.msra.mxu0 %v333
        %454 = vmatmul.f32.gmra.mxu0 %v343
        %v455 = vpop.f32.mrf.mxu0
        %v456 = vadd.f32 %v339, %v455
        %457 = vmatmul.f32.gmra.mxu0 %v346
        %v458 = vpop.f32.mrf.mxu0
        %v459 = vadd.f32 %v339, %v458
        %460 = vmatmul.f32.gmra.mxu0 %v349
        %v461 = vpop.f32.mrf.mxu0
        %v462 = vadd.f32 %v339, %v461
        %463 = vmatmul.f32.gmra.mxu0 %v352
        %v464 = vpop.f32.mrf.mxu0
        %v465 = vadd.f32 %v339, %v464
        %466 = vmatmul.f32.gmra.mxu0 %v355
        %v467 = vpop.f32.mrf.mxu0
        %v468 = vadd.f32 %v339, %v467
        %469 = vmatmul.f32.gmra.mxu0 %v358
        %v470 = vpop.f32.mrf.mxu0
        %v471 = vadd.f32 %v339, %v470
        %472 = vmatmul.f32.gmra.mxu0 %v361
        %v473 = vpop.f32.mrf.mxu0
        %v474 = vadd.f32 %v339, %v473
        %475 = vmatmul.f32.gmra.mxu0 %v364
        %v476 = vpop.f32.mrf.mxu0
        %v477 = vadd.f32 %v339, %v476
        %478 = vmatmul.f32.gmra.mxu0 %v367
        %v479 = vpop.f32.mrf.mxu0
        %v480 = vadd.f32 %v339, %v479
        %481 = vmatmul.f32.gmra.mxu0 %v370
        %v482 = vpop.f32.mrf.mxu0
        %v483 = vadd.f32 %v339, %v482
        %484 = vmatmul.f32.gmra.mxu0 %v373
        %v485 = vpop.f32.mrf.mxu0
        %v486 = vadd.f32 %v339, %v485
        %487 = vmatmul.f32.gmra.mxu0 %v376
        %v488 = vpop.f32.mrf.mxu0
        %v489 = vadd.f32 %v339, %v488
        %490 = vmatmul.f32.gmra.mxu0 %v379
        %v491 = vpop.f32.mrf.mxu0
        %v492 = vadd.f32 %v339, %v491
        %493 = vmatmul.f32.gmra.mxu0 %v382
        %v494 = vpop.f32.mrf.mxu0
        %v495 = vadd.f32 %v339, %v494
        %496 = vmatmul.f32.gmra.mxu0 %v385
        %v497 = vpop.f32.mrf.mxu0
        %v498 = vadd.f32 %v339, %v497
        %499 = vmatmul.f32.gmra.mxu0 %v388
        %v500 = vpop.f32.mrf.mxu0
        %v501 = vadd.f32 %v339, %v500
        %502 = vmatmul.f32.gmra.mxu0 %v391
        %v503 = vpop.f32.mrf.mxu0
        %v504 = vadd.f32 %v339, %v503
        %505 = vmatmul.f32.gmra.mxu0 %v394
        %v506 = vpop.f32.mrf.mxu0
        %v507 = vadd.f32 %v339, %v506
        %508 = vmatmul.f32.gmra.mxu0 %v397
        %v509 = vpop.f32.mrf.mxu0
        %v510 = vadd.f32 %v339, %v509
        %511 = vmatmul.f32.gmra.mxu0 %v400
        %v512 = vpop.f32.mrf.mxu0
        %v513 = vadd.f32 %v339, %v512
        %514 = vmatmul.f32.gmra.mxu0 %v403
        %v515 = vpop.f32.mrf.mxu0
        %v516 = vadd.f32 %v339, %v515
        %517 = vmatmul.f32.gmra.mxu0 %v406
        %v518 = vpop.f32.mrf.mxu0
        %v519 = vadd.f32 %v339, %v518
        %520 = vmatmul.f32.gmra.mxu0 %v409
        %v521 = vpop.f32.mrf.mxu0
        %v522 = vadd.f32 %v339, %v521
        %523 = vmatmul.f32.gmra.mxu0 %v412
        %v524 = vpop.f32.mrf.mxu0
        %v525 = vadd.f32 %v339, %v524
        %526 = vmatmul.f32.gmra.mxu0 %v415
        %v527 = vpop.f32.mrf.mxu0
        %v528 = vadd.f32 %v339, %v527
        %529 = vmatmul.f32.gmra.mxu0 %v418
        %v530 = vpop.f32.mrf.mxu0
        %v531 = vadd.f32 %v339, %v530
        %532 = vmatmul.f32.gmra.mxu0 %v421
        %v533 = vpop.f32.mrf.mxu0
        %v534 = vadd.f32 %v339, %v533
        %535 = vmatmul.f32.gmra.mxu0 %v424
        %v536 = vpop.f32.mrf.mxu0
        %v537 = vadd.f32 %v339, %v536
        %538 = vmatmul.f32.gmra.mxu0 %v427
        %v539 = vpop.f32.mrf.mxu0
        %v540 = vadd.f32 %v339, %v539
        %541 = vmatmul.f32.gmra.mxu0 %v430
        %v542 = vpop.f32.mrf.mxu0
        %v543 = vadd.f32 %v339, %v542
        %544 = vmatmul.f32.gmra.mxu0 %v433
        %v545 = vpop.f32.mrf.mxu0
        %v546 = vadd.f32 %v339, %v545
        %547 = vmatmul.f32.gmra.mxu0 %v436
        %v548 = vpop.f32.mrf.mxu0
        %v549 = vadd.f32 %v339, %v548
        %550 = vdwg.mxu0
        %v551 = vmax.f32 %v456, 0.0
        %v552 = vmax.f32 %v459, 0.0
        %v553 = vmax.f32 %v462, 0.0
        %v554 = vmax.f32 %v465, 0.0
        %v555 = vmax.f32 %v468, 0.0
        %v556 = vmax.f32 %v471, 0.0
        %v557 = vmax.f32 %v474, 0.0
        %v558 = vmax.f32 %v477, 0.0
        %v559 = vmax.f32 %v480, 0.0
        %v560 = vmax.f32 %v483, 0.0
        %v561 = vmax.f32 %v486, 0.0
        %v562 = vmax.f32 %v489, 0.0
        %v563 = vmax.f32 %v492, 0.0
        %v564 = vmax.f32 %v495, 0.0
        %v565 = vmax.f32 %v498, 0.0
        %v566 = vmax.f32 %v501, 0.0
        %v567 = vmax.f32 %v504, 0.0
        %v568 = vmax.f32 %v507, 0.0
        %v569 = vmax.f32 %v510, 0.0
        %v570 = vmax.f32 %v513, 0.0
        %v571 = vmax.f32 %v516, 0.0
        %v572 = vmax.f32 %v519, 0.0
        %v573 = vmax.f32 %v522, 0.0
        %v574 = vmax.f32 %v525, 0.0
        %v575 = vmax.f32 %v528, 0.0
        %v576 = vmax.f32 %v531, 0.0
        %v577 = vmax.f32 %v534, 0.0
        %v578 = vmax.f32 %v537, 0.0
        %v579 = vmax.f32 %v540, 0.0
        %v580 = vmax.f32 %v543, 0.0
        %v581 = vmax.f32 %v546, 0.0
        %v582 = vmax.f32 %v549, 0.0
        %v583 = vld [vmem:[%s3] sm:$0xff]
        %v584 = vld [vmem:[%s3 + $0x8] sm:$0xff]
        %v585 = vld [vmem:[%s3 + $0x10] sm:$0xff]
        %v586 = vld [vmem:[%s3 + $0x18] sm:$0xff]
        %v587 = vld [vmem:[%s3 + $0x20] sm:$0xff]
        %v588 = vld [vmem:[%s3 + $0x28] sm:$0xff]
        %v589 = vld [vmem:[%s3 + $0x30] sm:$0xff]
        %v590 = vld [vmem:[%s3 + $0x38] sm:$0xff]
        %v591 = vld [vmem:[%s3 + $0x40] sm:$0xff]
        %v592 = vld [vmem:[%s3 + $0x48] sm:$0xff]
        %v593 = vld [vmem:[%s3 + $0x50] sm:$0xff]
        %v594 = vld [vmem:[%s3 + $0x58] sm:$0xff]
        %v595 = vld [vmem:[%s3 + $0x60] sm:$0xff]
        %v596 = vld [vmem:[%s3 + $0x68] sm:$0xff]
        %v597 = vld [vmem:[%s3 + $0x70] sm:$0xff]
        %v598 = vld [vmem:[%s3 + $0x78] sm:$0xff]
        %v599 = vld [vmem:[%s4] sm:$0x1]
        %v601 = vperm.slane %v599, 0
        %603 = vmatpush.msra.mxu0 %v598
        %604 = vmatpush.msra.mxu0 %v597
        %605 = vmatpush.msra.mxu0 %v596
        %606 = vmatpush.msra.mxu0 %v595
        %607 = vmatpush.msra.mxu0 %v594
        %608 = vmatpush.msra.mxu0 %v593
        %609 = vmatpush.msra.mxu0 %v592
        %610 = vmatpush.msra.mxu0 %v591
        %611 = vmatpush.msra.mxu0 %v590
        %612 = vmatpush.msra.mxu0 %v589
        %613 = vmatpush.msra.mxu0 %v588
        %614 = vmatpush.msra.mxu0 %v587
        %615 = vmatpush.msra.mxu0 %v586
        %616 = vmatpush.msra.mxu0 %v585
        %617 = vmatpush.msra.mxu0 %v584
        %618 = vmatpush.msra.mxu0 %v583
        %619 = vmatmul.f32.gmra.mxu0 %v551
        %v620 = vpop.f32.mrf.mxu0
        %v621 = vadd.f32 %v601, %v620
        %622 = vmatmul.f32.gmra.mxu0 %v552
        %v623 = vpop.f32.mrf.mxu0
        %v624 = vadd.f32 %v601, %v623
        %625 = vmatmul.f32.gmra.mxu0 %v553
        %v626 = vpop.f32.mrf.mxu0
        %v627 = vadd.f32 %v601, %v626
        %628 = vmatmul.f32.gmra.mxu0 %v554
        %v629 = vpop.f32.mrf.mxu0
        %v630 = vadd.f32 %v601, %v629
        %631 = vmatmul.f32.gmra.mxu0 %v555
        %v632 = vpop.f32.mrf.mxu0
        %v633 = vadd.f32 %v601, %v632
        %634 = vmatmul.f32.gmra.mxu0 %v556
        %v635 = vpop.f32.mrf.mxu0
        %v636 = vadd.f32 %v601, %v635
        %637 = vmatmul.f32.gmra.mxu0 %v557
        %v638 = vpop.f32.mrf.mxu0
        %v639 = vadd.f32 %v601, %v638
        %640 = vmatmul.f32.gmra.mxu0 %v558
        %v641 = vpop.f32.mrf.mxu0
        %v642 = vadd.f32 %v601, %v641
        %643 = vmatmul.f32.gmra.mxu0 %v559
        %v644 = vpop.f32.mrf.mxu0
        %v645 = vadd.f32 %v601, %v644
        %646 = vmatmul.f32.gmra.mxu0 %v560
        %v647 = vpop.f32.mrf.mxu0
        %v648 = vadd.f32 %v601, %v647
        %649 = vmatmul.f32.gmra.mxu0 %v561
        %v650 = vpop.f32.mrf.mxu0
        %v651 = vadd.f32 %v601, %v650
        %652 = vmatmul.f32.gmra.mxu0 %v562
        %v653 = vpop.f32.mrf.mxu0
        %v654 = vadd.f32 %v601, %v653
        %655 = vmatmul.f32.gmra.mxu0 %v563
        %v656 = vpop.f32.mrf.mxu0
        %v657 = vadd.f32 %v601, %v656
        %658 = vmatmul.f32.gmra.mxu0 %v564
        %v659 = vpop.f32.mrf.mxu0
        %v660 = vadd.f32 %v601, %v659
        %661 = vmatmul.f32.gmra.mxu0 %v565
        %v662 = vpop.f32.mrf.mxu0
        %v663 = vadd.f32 %v601, %v662
        %664 = vmatmul.f32.gmra.mxu0 %v566
        %v665 = vpop.f32.mrf.mxu0
        %v666 = vadd.f32 %v601, %v665
        %667 = vmatmul.f32.gmra.mxu0 %v567
        %v668 = vpop.f32.mrf.mxu0
        %v669 = vadd.f32 %v601, %v668
        %670 = vmatmul.f32.gmra.mxu0 %v568
        %v671 = vpop.f32.mrf.mxu0
        %v672 = vadd.f32 %v601, %v671
        %673 = vmatmul.f32.gmra.mxu0 %v569
        %v674 = vpop.f32.mrf.mxu0
        %v675 = vadd.f32 %v601, %v674
        %676 = vmatmul.f32.gmra.mxu0 %v570
        %v677 = vpop.f32.mrf.mxu0
        %v678 = vadd.f32 %v601, %v677
        %679 = vmatmul.f32.gmra.mxu0 %v571
        %v680 = vpop.f32.mrf.mxu0
        %v681 = vadd.f32 %v601, %v680
        %682 = vmatmul.f32.gmra.mxu0 %v572
        %v683 = vpop.f32.mrf.mxu0
        %v684 = vadd.f32 %v601, %v683
        %685 = vmatmul.f32.gmra.mxu0 %v573
        %v686 = vpop.f32.mrf.mxu0
        %v687 = vadd.f32 %v601, %v686
        %688 = vmatmul.f32.gmra.mxu0 %v574
        %v689 = vpop.f32.mrf.mxu0
        %v690 = vadd.f32 %v601, %v689
        %691 = vmatmul.f32.gmra.mxu0 %v575
        %v692 = vpop.f32.mrf.mxu0
        %v693 = vadd.f32 %v601, %v692
        %694 = vmatmul.f32.gmra.mxu0 %v576
        %v695 = vpop.f32.mrf.mxu0
        %v696 = vadd.f32 %v601, %v695
        %697 = vmatmul.f32.gmra.mxu0 %v577
        %v698 = vpop.f32.mrf.mxu0
        %v699 = vadd.f32 %v601, %v698
        %700 = vmatmul.f32.gmra.mxu0 %v578
        %v701 = vpop.f32.mrf.mxu0
        %v702 = vadd.f32 %v601, %v701
        %703 = vmatmul.f32.gmra.mxu0 %v579
        %v704 = vpop.f32.mrf.mxu0
        %v705 = vadd.f32 %v601, %v704
        %706 = vmatmul.f32.gmra.mxu0 %v580
        %v707 = vpop.f32.mrf.mxu0
        %v708 = vadd.f32 %v601, %v707
        %709 = vmatmul.f32.gmra.mxu0 %v581
        %v710 = vpop.f32.mrf.mxu0
        %v711 = vadd.f32 %v601, %v710
        %712 = vmatmul.f32.gmra.mxu0 %v582
        %v713 = vpop.f32.mrf.mxu0
        %v714 = vadd.f32 %v601, %v713
        %715 = vdwg.mxu0
        %v716 = vmax.f32 %v621, 0.0
        %v717 = vmax.f32 %v624, 0.0
        %v718 = vmax.f32 %v627, 0.0
        %v719 = vmax.f32 %v630, 0.0
        %v720 = vmax.f32 %v633, 0.0
        %v721 = vmax.f32 %v636, 0.0
        %v722 = vmax.f32 %v639, 0.0
        %v723 = vmax.f32 %v642, 0.0
        %v724 = vmax.f32 %v645, 0.0
        %v725 = vmax.f32 %v648, 0.0
        %v726 = vmax.f32 %v651, 0.0
        %v727 = vmax.f32 %v654, 0.0
        %v728 = vmax.f32 %v657, 0.0
        %v729 = vmax.f32 %v660, 0.0
        %v730 = vmax.f32 %v663, 0.0
        %v731 = vmax.f32 %v666, 0.0
        %v732 = vmax.f32 %v669, 0.0
        %v733 = vmax.f32 %v672, 0.0
        %v734 = vmax.f32 %v675, 0.0
        %v735 = vmax.f32 %v678, 0.0
        %v736 = vmax.f32 %v681, 0.0
        %v737 = vmax.f32 %v684, 0.0
        %v738 = vmax.f32 %v687, 0.0
        %v739 = vmax.f32 %v690, 0.0
        %v740 = vmax.f32 %v693, 0.0
        %v741 = vmax.f32 %v696, 0.0
        %v742 = vmax.f32 %v699, 0.0
        %v743 = vmax.f32 %v702, 0.0
        %v744 = vmax.f32 %v705, 0.0
        %v745 = vmax.f32 %v708, 0.0
        %v746 = vmax.f32 %v711, 0.0
        %v747 = vmax.f32 %v714, 0.0
        %v748 = vld [vmem:[%s5] sm:$0x1]
        %v750 = vperm.slane %v748, 0
        %v752 = vmul.f32 %v716, %v750
        %v753 = vmul.f32 %v717, %v750
        %v754 = vmul.f32 %v718, %v750
        %v755 = vmul.f32 %v719, %v750
        %v756 = vmul.f32 %v720, %v750
        %v757 = vmul.f32 %v721, %v750
        %v758 = vmul.f32 %v722, %v750
        %v759 = vmul.f32 %v723, %v750
        %v760 = vmul.f32 %v724, %v750
        %v761 = vmul.f32 %v725, %v750
        %v762 = vmul.f32 %v726, %v750
        %v763 = vmul.f32 %v727, %v750
        %v764 = vmul.f32 %v728, %v750
        %v765 = vmul.f32 %v729, %v750
        %v766 = vmul.f32 %v730, %v750
        %v767 = vmul.f32 %v731, %v750
        %v768 = vmul.f32 %v732, %v750
        %v769 = vmul.f32 %v733, %v750
        %v770 = vmul.f32 %v734, %v750
        %v771 = vmul.f32 %v735, %v750
        %v772 = vmul.f32 %v736, %v750
        %v773 = vmul.f32 %v737, %v750
        %v774 = vmul.f32 %v738, %v750
        %v775 = vmul.f32 %v739, %v750
        %v776 = vmul.f32 %v740, %v750
        %v777 = vmul.f32 %v741, %v750
        %v778 = vmul.f32 %v742, %v750
        %v779 = vmul.f32 %v743, %v750
        %v780 = vmul.f32 %v744, %v750
        %v781 = vmul.f32 %v745, %v750
        %v782 = vmul.f32 %v746, %v750
        %v783 = vmul.f32 %v747, %v750
        %784 = vadd.xlane.f32.xlu0 %v752
        %v785 = vpop.xlane.xlu0 %784
        %786 = vadd.xlane.f32.xlu0 %v753
        %v787 = vpop.xlane.xlu0 %786
        %788 = vadd.xlane.f32.xlu0 %v754
        %v789 = vpop.xlane.xlu0 %788
        %790 = vadd.xlane.f32.xlu0 %v755
        %v791 = vpop.xlane.xlu0 %790
        %792 = vadd.xlane.f32.xlu0 %v756
        %v793 = vpop.xlane.xlu0 %792
        %794 = vadd.xlane.f32.xlu0 %v757
        %v795 = vpop.xlane.xlu0 %794
        %796 = vadd.xlane.f32.xlu0 %v758
        %v797 = vpop.xlane.xlu0 %796
        %798 = vadd.xlane.f32.xlu0 %v759
        %v799 = vpop.xlane.xlu0 %798
        %800 = vadd.xlane.f32.xlu0 %v760
        %v801 = vpop.xlane.xlu0 %800
        %802 = vadd.xlane.f32.xlu0 %v761
        %v803 = vpop.xlane.xlu0 %802
        %804 = vadd.xlane.f32.xlu0 %v762
        %v805 = vpop.xlane.xlu0 %804
        %806 = vadd.xlane.f32.xlu0 %v763
        %v807 = vpop.xlane.xlu0 %806
        %808 = vadd.xlane.f32.xlu0 %v764
        %v809 = vpop.xlane.xlu0 %808
        %810 = vadd.xlane.f32.xlu0 %v765
        %v811 = vpop.xlane.xlu0 %810
        %812 = vadd.xlane.f32.xlu0 %v766
        %v813 = vpop.xlane.xlu0 %812
        %814 = vadd.xlane.f32.xlu0 %v767
        %v815 = vpop.xlane.xlu0 %814
        %816 = vadd.xlane.f32.xlu0 %v768
        %v817 = vpop.xlane.xlu0 %816
        %818 = vadd.xlane.f32.xlu0 %v769
        %v819 = vpop.xlane.xlu0 %818
        %820 = vadd.xlane.f32.xlu0 %v770
        %v821 = vpop.xlane.xlu0 %820
        %822 = vadd.xlane.f32.xlu0 %v771
        %v823 = vpop.xlane.xlu0 %822
        %824 = vadd.xlane.f32.xlu0 %v772
        %v825 = vpop.xlane.xlu0 %824
        %826 = vadd.xlane.f32.xlu0 %v773
        %v827 = vpop.xlane.xlu0 %826
        %828 = vadd.xlane.f32.xlu0 %v774
        %v829 = vpop.xlane.xlu0 %828
        %830 = vadd.xlane.f32.xlu0 %v775
        %v831 = vpop.xlane.xlu0 %830
        %832 = vadd.xlane.f32.xlu0 %v776
        %v833 = vpop.xlane.xlu0 %832
        %834 = vadd.xlane.f32.xlu0 %v777
        %v835 = vpop.xlane.xlu0 %834
        %836 = vadd.xlane.f32.xlu0 %v778
        %v837 = vpop.xlane.xlu0 %836
        %838 = vadd.xlane.f32.xlu0 %v779
        %v839 = vpop.xlane.xlu0 %838
        %840 = vadd.xlane.f32.xlu0 %v780
        %v841 = vpop.xlane.xlu0 %840
        %842 = vadd.xlane.f32.xlu0 %v781
        %v843 = vpop.xlane.xlu0 %842
        %844 = vadd.xlane.f32.xlu0 %v782
        %v845 = vpop.xlane.xlu0 %844
        %846 = vadd.xlane.f32.xlu0 %v783
        %v847 = vpop.xlane.xlu0 %846
        %s848 = sld [smem:[#allocation2]]
        %v849 = vstv %s848
        %v850 = vadd.f32 %v785, %v849
        %v851 = vadd.f32 %v787, %v849
        %v852 = vadd.f32 %v789, %v849
        %v853 = vadd.f32 %v791, %v849
        %v854 = vadd.f32 %v793, %v849
        %v855 = vadd.f32 %v795, %v849
        %v856 = vadd.f32 %v797, %v849
        %v857 = vadd.f32 %v799, %v849
        %v858 = vadd.f32 %v801, %v849
        %v859 = vadd.f32 %v803, %v849
        %v860 = vadd.f32 %v805, %v849
        %v861 = vadd.f32 %v807, %v849
        %v862 = vadd.f32 %v809, %v849
        %v863 = vadd.f32 %v811, %v849
        %v864 = vadd.f32 %v813, %v849
        %v865 = vadd.f32 %v815, %v849
        %v866 = vadd.f32 %v817, %v849
        %v867 = vadd.f32 %v819, %v849
        %v868 = vadd.f32 %v821, %v849
        %v869 = vadd.f32 %v823, %v849
        %v870 = vadd.f32 %v825, %v849
        %v871 = vadd.f32 %v827, %v849
        %v872 = vadd.f32 %v829, %v849
        %v873 = vadd.f32 %v831, %v849
        %v874 = vadd.f32 %v833, %v849
        %v875 = vadd.f32 %v835, %v849
        %v876 = vadd.f32 %v837, %v849
        %v877 = vadd.f32 %v839, %v849
        %v878 = vadd.f32 %v841, %v849
        %v879 = vadd.f32 %v843, %v849
        %v880 = vadd.f32 %v845, %v849
        %v881 = vadd.f32 %v847, %v849
        %vm882 = vcmask 7168
        %883 = vst.msk [vmem:[%s281] sm:$0xff] %vm882, %v850
        %884 = vst.msk [vmem:[%s281 + $0x8] sm:$0xff] %vm882, %v851
        %885 = vst.msk [vmem:[%s281 + $0x10] sm:$0xff] %vm882, %v852
        %886 = vst.msk [vmem:[%s281 + $0x18] sm:$0xff] %vm882, %v853
        %887 = vst.msk [vmem:[%s281 + $0x20] sm:$0xff] %vm882, %v854
        %888 = vst.msk [vmem:[%s281 + $0x28] sm:$0xff] %vm882, %v855
        %889 = vst.msk [vmem:[%s281 + $0x30] sm:$0xff] %vm882, %v856
        %890 = vst.msk [vmem:[%s281 + $0x38] sm:$0xff] %vm882, %v857
        %891 = vst.msk [vmem:[%s281 + $0x40] sm:$0xff] %vm882, %v858
        %892 = vst.msk [vmem:[%s281 + $0x48] sm:$0xff] %vm882, %v859
        %893 = vst.msk [vmem:[%s281 + $0x50] sm:$0xff] %vm882, %v860
        %894 = vst.msk [vmem:[%s281 + $0x58] sm:$0xff] %vm882, %v861
        %895 = vst.msk [vmem:[%s281 + $0x60] sm:$0xff] %vm882, %v862
        %896 = vst.msk [vmem:[%s281 + $0x68] sm:$0xff] %vm882, %v863
        %897 = vst.msk [vmem:[%s281 + $0x70] sm:$0xff] %vm882, %v864
        %898 = vst.msk [vmem:[%s281 + $0x78] sm:$0xff] %vm882, %v865
        %899 = vst.msk [vmem:[%s281 + $0x80] sm:$0xff] %vm882, %v866
        %900 = vst.msk [vmem:[%s281 + $0x88] sm:$0xff] %vm882, %v867
        %901 = vst.msk [vmem:[%s281 + $0x90] sm:$0xff] %vm882, %v868
        %902 = vst.msk [vmem:[%s281 + $0x98] sm:$0xff] %vm882, %v869
        %903 = vst.msk [vmem:[%s281 + $0xa0] sm:$0xff] %vm882, %v870
        %904 = vst.msk [vmem:[%s281 + $0xa8] sm:$0xff] %vm882, %v871
        %905 = vst.msk [vmem:[%s281 + $0xb0] sm:$0xff] %vm882, %v872
        %906 = vst.msk [vmem:[%s281 + $0xb8] sm:$0xff] %vm882, %v873
        %907 = vst.msk [vmem:[%s281 + $0xc0] sm:$0xff] %vm882, %v874
        %908 = vst.msk [vmem:[%s281 + $0xc8] sm:$0xff] %vm882, %v875
        %909 = vst.msk [vmem:[%s281 + $0xd0] sm:$0xff] %vm882, %v876
        %910 = vst.msk [vmem:[%s281 + $0xd8] sm:$0xff] %vm882, %v877
        %911 = vst.msk [vmem:[%s281 + $0xe0] sm:$0xff] %vm882, %v878
        %912 = vst.msk [vmem:[%s281 + $0xe8] sm:$0xff] %vm882, %v879
        %913 = vst.msk [vmem:[%s281 + $0xf0] sm:$0xff] %vm882, %v880
        %914 = vst.msk [vmem:[%s281 + $0xf8] sm:$0xff] %vm882, %v881
        %s915 = sand.u32 %s179, 1
        %s916 = sand.u32 %s179, 1
        %s917 = smul.addr %s916, 256
        %s918 = scalar_lea.vmem [#allocation3], %s917
        // Predicated region
        $region49: #{critic_forward.1} parent=47 // pred_check
          %p919 = pneg %p189
        $region50: #{critic_forward.1} parent=47 // pred_check_branch
          %921 = sbr.rel (%p919) target = $region52
        $region51: #{critic_forward.1} parent=47 // pred_region
          %s922 = smul.u32 32, %s19
          %s923 = ssub.s32 38, %s922
          %p924 = scmp.lt.s32.totalorder %s923, 32
          %s925 = scalar_select %p924, %s923, 32
          %s926 = smul.u32 8, %s925
          %p927 = scmp.ne.s32.totalorder 0, %s926
          %s928 = smul.addr %s922, 8
          %s929 = scalar_lea.vmem %s7, %s928
          // Predicated region
          $region53: #{critic_forward.1} parent=51 // pred_check
            %p930 = pneg %p927
          $region54: #{critic_forward.1} parent=51 // pred_check_branch
            %932 = sbr.rel (%p930) target = $region56
          $region55: #{critic_forward.1} parent=51 // pred_region
            // Predicated region
            $region57: #{critic_forward.1} parent=55 // pred_check
              _
            $region58: #{critic_forward.1} parent=55 // pred_check_branch
              %934 = sbr.rel (0) target = $region60
            $region59: #{critic_forward.1} parent=55 // pred_region
              // Predicated region
              $region79: #{critic_forward.1} parent=59 // pred_check
                _
              $region80: #{critic_forward.1} parent=59 // pred_check_branch
                %1046 = sbr.rel (0) target = $region82
              $region81: #{critic_forward.1} parent=59 // pred_region
                %s1047 = sshrl.u32 %s925, 5
                // While loop
                $region83: #{critic_forward.1} parent=81 // loop_pre_header
                  _
                $region84: #{critic_forward.1} parent=81 // loop_header
                  %s1049 = sphi 0, %s1051
                  %p1050 = scmp.ge.s32.totalorder %s1049, %s1047
                  %s1054 = sphi 0, %s1123
                  %s1055 = sphi %s918, %s1126
                  %s1056 = sphi %s929, %s1127
                $region85: #{critic_forward.1} parent=81 // loop_header_branch
                  %1053 = sbr.rel (%p1050) target = $region89
                $region86: #{critic_forward.1} parent=81 // loop_body
                  %v1057 = vld [vmem:[%s1055] sm:$0xff]
                  %1058 = vst [vmem:[%s1056] sm:$0xff] %v1057
                  %v1059 = vld [vmem:[%s1055 + $0x8] sm:$0xff]
                  %1060 = vst [vmem:[%s1056 + $0x8] sm:$0xff] %v1059
                  %v1061 = vld [vmem:[%s1055 + $0x10] sm:$0xff]
                  %1062 = vst [vmem:[%s1056 + $0x10] sm:$0xff] %v1061
                  %v1063 = vld [vmem:[%s1055 + $0x18] sm:$0xff]
                  %1064 = vst [vmem:[%s1056 + $0x18] sm:$0xff] %v1063
                  %v1065 = vld [vmem:[%s1055 + $0x20] sm:$0xff]
                  %1066 = vst [vmem:[%s1056 + $0x20] sm:$0xff] %v1065
                  %v1067 = vld [vmem:[%s1055 + $0x28] sm:$0xff]
                  %1068 = vst [vmem:[%s1056 + $0x28] sm:$0xff] %v1067
                  %v1069 = vld [vmem:[%s1055 + $0x30] sm:$0xff]
                  %1070 = vst [vmem:[%s1056 + $0x30] sm:$0xff] %v1069
                  %v1071 = vld [vmem:[%s1055 + $0x38] sm:$0xff]
                  %1072 = vst [vmem:[%s1056 + $0x38] sm:$0xff] %v1071
                  %v1073 = vld [vmem:[%s1055 + $0x40] sm:$0xff]
                  %1074 = vst [vmem:[%s1056 + $0x40] sm:$0xff] %v1073
                  %v1075 = vld [vmem:[%s1055 + $0x48] sm:$0xff]
                  %1076 = vst [vmem:[%s1056 + $0x48] sm:$0xff] %v1075
                  %v1077 = vld [vmem:[%s1055 + $0x50] sm:$0xff]
                  %1078 = vst [vmem:[%s1056 + $0x50] sm:$0xff] %v1077
                  %v1079 = vld [vmem:[%s1055 + $0x58] sm:$0xff]
                  %1080 = vst [vmem:[%s1056 + $0x58] sm:$0xff] %v1079
                  %v1081 = vld [vmem:[%s1055 + $0x60] sm:$0xff]
                  %1082 = vst [vmem:[%s1056 + $0x60] sm:$0xff] %v1081
                  %v1083 = vld [vmem:[%s1055 + $0x68] sm:$0xff]
                  %1084 = vst [vmem:[%s1056 + $0x68] sm:$0xff] %v1083
                  %v1085 = vld [vmem:[%s1055 + $0x70] sm:$0xff]
                  %1086 = vst [vmem:[%s1056 + $0x70] sm:$0xff] %v1085
                  %v1087 = vld [vmem:[%s1055 + $0x78] sm:$0xff]
                  %1088 = vst [vmem:[%s1056 + $0x78] sm:$0xff] %v1087
                  %v1089 = vld [vmem:[%s1055 + $0x80] sm:$0xff]
                  %1090 = vst [vmem:[%s1056 + $0x80] sm:$0xff] %v1089
                  %v1091 = vld [vmem:[%s1055 + $0x88] sm:$0xff]
                  %1092 = vst [vmem:[%s1056 + $0x88] sm:$0xff] %v1091
                  %v1093 = vld [vmem:[%s1055 + $0x90] sm:$0xff]
                  %1094 = vst [vmem:[%s1056 + $0x90] sm:$0xff] %v1093
                  %v1095 = vld [vmem:[%s1055 + $0x98] sm:$0xff]
                  %1096 = vst [vmem:[%s1056 + $0x98] sm:$0xff] %v1095
                  %v1097 = vld [vmem:[%s1055 + $0xa0] sm:$0xff]
                  %1098 = vst [vmem:[%s1056 + $0xa0] sm:$0xff] %v1097
                  %v1099 = vld [vmem:[%s1055 + $0xa8] sm:$0xff]
                  %1100 = vst [vmem:[%s1056 + $0xa8] sm:$0xff] %v1099
                  %v1101 = vld [vmem:[%s1055 + $0xb0] sm:$0xff]
                  %1102 = vst [vmem:[%s1056 + $0xb0] sm:$0xff] %v1101
                  %v1103 = vld [vmem:[%s1055 + $0xb8] sm:$0xff]
                  %1104 = vst [vmem:[%s1056 + $0xb8] sm:$0xff] %v1103
                  %v1105 = vld [vmem:[%s1055 + $0xc0] sm:$0xff]
                  %1106 = vst [vmem:[%s1056 + $0xc0] sm:$0xff] %v1105
                  %v1107 = vld [vmem:[%s1055 + $0xc8] sm:$0xff]
                  %1108 = vst [vmem:[%s1056 + $0xc8] sm:$0xff] %v1107
                  %v1109 = vld [vmem:[%s1055 + $0xd0] sm:$0xff]
                  %1110 = vst [vmem:[%s1056 + $0xd0] sm:$0xff] %v1109
                  %v1111 = vld [vmem:[%s1055 + $0xd8] sm:$0xff]
                  %1112 = vst [vmem:[%s1056 + $0xd8] sm:$0xff] %v1111
                  %v1113 = vld [vmem:[%s1055 + $0xe0] sm:$0xff]
                  %1114 = vst [vmem:[%s1056 + $0xe0] sm:$0xff] %v1113
                  %v1115 = vld [vmem:[%s1055 + $0xe8] sm:$0xff]
                  %1116 = vst [vmem:[%s1056 + $0xe8] sm:$0xff] %v1115
                  %v1117 = vld [vmem:[%s1055 + $0xf0] sm:$0xff]
                  %1118 = vst [vmem:[%s1056 + $0xf0] sm:$0xff] %v1117
                  %v1119 = vld [vmem:[%s1055 + $0xf8] sm:$0xff]
                  %1120 = vst [vmem:[%s1056 + $0xf8] sm:$0xff] %v1119
                  %s1121 = sadd.s32 1, %s1054
                  %p1122 = scmp.ge.s32.totalorder %s1121, %s1047
                  %s1123 = scalar_select %p1122, 0, %s1121
                  %s1124 = smul.u32 %s1123, 256
                  %s1125 = smul.u32 %s1123, 256
                  %s1126 = scalar_lea.vmem %s918, %s1124 [#allocation3]
                  %s1127 = scalar_lea.vmem %s929, %s1125
                $region87: #{critic_forward.1} parent=81 // loop_footer
                  %s1051 = sadd.s32 %s1049, 1
                $region88: #{critic_forward.1} parent=81 // loop_footer_branch
                  %1048 = sbr.rel target = $region84
                $region89: #{critic_forward.1} parent=81 // loop_exit
                  _
                %s1128 = sshrl.u32 %s925, 5
                %s1129 = sand.u32 %s925, 31
                %s1130 = smul.u32 %s1128, 32
                %s1131 = smul.u32 8, %s1130
                %s1132 = scalar_lea.vmem %s918, %s1131 [#allocation3]
                %s1133 = smul.u32 8, %s1130
                %s1134 = scalar_lea.vmem %s929, %s1133
                // While loop
                $region90: #{critic_forward.1} parent=81 // loop_pre_header
                  _
                $region91: #{critic_forward.1} parent=81 // loop_header
                  %s1136 = sphi 0, %s1138
                  %p1137 = scmp.ge.s32.totalorder %s1136, %s1129
                  %s1141 = sphi 0, %s1148
                  %s1142 = sphi %s1132, %s1151
                  %s1143 = sphi %s1134, %s1152
                $region92: #{critic_forward.1} parent=81 // loop_header_branch
                  %1140 = sbr.rel (%p1137) target = $region96
                $region93: #{critic_forward.1} parent=81 // loop_body
                  %v1144 = vld [vmem:[%s1142] sm:$0xff]
                  %1145 = vst [vmem:[%s1143] sm:$0xff] %v1144
                  %s1146 = sadd.s32 1, %s1141
                  %p1147 = scmp.ge.s32.totalorder %s1146, %s1129
                  %s1148 = scalar_select %p1147, 0, %s1146
                  %s1149 = smul.u32 %s1148, 8
                  %s1150 = smul.u32 %s1148, 8
                  %s1151 = scalar_lea.vmem %s1132, %s1149 [#allocation3]
                  %s1152 = scalar_lea.vmem %s1134, %s1150
                $region94: #{critic_forward.1} parent=81 // loop_footer
                  %s1138 = sadd.s32 %s1136, 1
                $region95: #{critic_forward.1} parent=81 // loop_footer_branch
                  %1135 = sbr.rel target = $region91
                $region96: #{critic_forward.1} parent=81 // loop_exit
                  _
              $region82: #{critic_forward.1} parent=59 // pred_fallthru
                _
              // Predicated region
              $region97: #{critic_forward.1} parent=59 // pred_check
                _
              $region98: #{critic_forward.1} parent=59 // pred_check_branch
                %1154 = sbr.rel target = $region100
              $region99: #{critic_forward.1} parent=59 // pred_region
                _
              $region100: #{critic_forward.1} parent=59 // pred_fallthru
                _
            $region60: #{critic_forward.1} parent=55 // pred_fallthru
              _
            // Predicated region
            $region61: #{critic_forward.1} parent=55 // pred_check
              _
            $region62: #{critic_forward.1} parent=55 // pred_check_branch
              %936 = sbr.rel target = $region64
            $region63: #{critic_forward.1} parent=55 // pred_region
              %s938 = ssub.s32 256, 1
              %s939 = sshrl.u32 %s925, 5
              // While loop
              $region65: #{critic_forward.1} parent=63 // loop_pre_header
                _
              $region66: #{critic_forward.1} parent=63 // loop_header
                %s941 = sphi 0, %s943
                %p942 = scmp.ge.s32.totalorder %s941, %s939
                %s946 = sphi 0, %s1015
                %s947 = sphi %s918, %s1018
                %s948 = sphi %s929, %s1019
              $region67: #{critic_forward.1} parent=63 // loop_header_branch
                %945 = sbr.rel (%p942) target = $region71
              $region68: #{critic_forward.1} parent=63 // loop_body
                %v949 = vld [vmem:[%s947] sm:%s938]
                %950 = vst [vmem:[%s948] sm:%s938] %v949
                %v951 = vld [vmem:[%s947 + $0x8] sm:%s938]
                %952 = vst [vmem:[%s948 + $0x8] sm:%s938] %v951
                %v953 = vld [vmem:[%s947 + $0x10] sm:%s938]
                %954 = vst [vmem:[%s948 + $0x10] sm:%s938] %v953
                %v955 = vld [vmem:[%s947 + $0x18] sm:%s938]
                %956 = vst [vmem:[%s948 + $0x18] sm:%s938] %v955
                %v957 = vld [vmem:[%s947 + $0x20] sm:%s938]
                %958 = vst [vmem:[%s948 + $0x20] sm:%s938] %v957
                %v959 = vld [vmem:[%s947 + $0x28] sm:%s938]
                %960 = vst [vmem:[%s948 + $0x28] sm:%s938] %v959
                %v961 = vld [vmem:[%s947 + $0x30] sm:%s938]
                %962 = vst [vmem:[%s948 + $0x30] sm:%s938] %v961
                %v963 = vld [vmem:[%s947 + $0x38] sm:%s938]
                %964 = vst [vmem:[%s948 + $0x38] sm:%s938] %v963
                %v965 = vld [vmem:[%s947 + $0x40] sm:%s938]
                %966 = vst [vmem:[%s948 + $0x40] sm:%s938] %v965
                %v967 = vld [vmem:[%s947 + $0x48] sm:%s938]
                %968 = vst [vmem:[%s948 + $0x48] sm:%s938] %v967
                %v969 = vld [vmem:[%s947 + $0x50] sm:%s938]
                %970 = vst [vmem:[%s948 + $0x50] sm:%s938] %v969
                %v971 = vld [vmem:[%s947 + $0x58] sm:%s938]
                %972 = vst [vmem:[%s948 + $0x58] sm:%s938] %v971
                %v973 = vld [vmem:[%s947 + $0x60] sm:%s938]
                %974 = vst [vmem:[%s948 + $0x60] sm:%s938] %v973
                %v975 = vld [vmem:[%s947 + $0x68] sm:%s938]
                %976 = vst [vmem:[%s948 + $0x68] sm:%s938] %v975
                %v977 = vld [vmem:[%s947 + $0x70] sm:%s938]
                %978 = vst [vmem:[%s948 + $0x70] sm:%s938] %v977
                %v979 = vld [vmem:[%s947 + $0x78] sm:%s938]
                %980 = vst [vmem:[%s948 + $0x78] sm:%s938] %v979
                %v981 = vld [vmem:[%s947 + $0x80] sm:%s938]
                %982 = vst [vmem:[%s948 + $0x80] sm:%s938] %v981
                %v983 = vld [vmem:[%s947 + $0x88] sm:%s938]
                %984 = vst [vmem:[%s948 + $0x88] sm:%s938] %v983
                %v985 = vld [vmem:[%s947 + $0x90] sm:%s938]
                %986 = vst [vmem:[%s948 + $0x90] sm:%s938] %v985
                %v987 = vld [vmem:[%s947 + $0x98] sm:%s938]
                %988 = vst [vmem:[%s948 + $0x98] sm:%s938] %v987
                %v989 = vld [vmem:[%s947 + $0xa0] sm:%s938]
                %990 = vst [vmem:[%s948 + $0xa0] sm:%s938] %v989
                %v991 = vld [vmem:[%s947 + $0xa8] sm:%s938]
                %992 = vst [vmem:[%s948 + $0xa8] sm:%s938] %v991
                %v993 = vld [vmem:[%s947 + $0xb0] sm:%s938]
                %994 = vst [vmem:[%s948 + $0xb0] sm:%s938] %v993
                %v995 = vld [vmem:[%s947 + $0xb8] sm:%s938]
                %996 = vst [vmem:[%s948 + $0xb8] sm:%s938] %v995
                %v997 = vld [vmem:[%s947 + $0xc0] sm:%s938]
                %998 = vst [vmem:[%s948 + $0xc0] sm:%s938] %v997
                %v999 = vld [vmem:[%s947 + $0xc8] sm:%s938]
                %1000 = vst [vmem:[%s948 + $0xc8] sm:%s938] %v999
                %v1001 = vld [vmem:[%s947 + $0xd0] sm:%s938]
                %1002 = vst [vmem:[%s948 + $0xd0] sm:%s938] %v1001
                %v1003 = vld [vmem:[%s947 + $0xd8] sm:%s938]
                %1004 = vst [vmem:[%s948 + $0xd8] sm:%s938] %v1003
                %v1005 = vld [vmem:[%s947 + $0xe0] sm:%s938]
                %1006 = vst [vmem:[%s948 + $0xe0] sm:%s938] %v1005
                %v1007 = vld [vmem:[%s947 + $0xe8] sm:%s938]
                %1008 = vst [vmem:[%s948 + $0xe8] sm:%s938] %v1007
                %v1009 = vld [vmem:[%s947 + $0xf0] sm:%s938]
                %1010 = vst [vmem:[%s948 + $0xf0] sm:%s938] %v1009
                %v1011 = vld [vmem:[%s947 + $0xf8] sm:%s938]
                %1012 = vst [vmem:[%s948 + $0xf8] sm:%s938] %v1011
                %s1013 = sadd.s32 1, %s946
                %p1014 = scmp.ge.s32.totalorder %s1013, %s939
                %s1015 = scalar_select %p1014, 0, %s1013
                %s1016 = smul.u32 %s1015, 256
                %s1017 = smul.u32 %s1015, 256
                %s1018 = scalar_lea.vmem %s918, %s1016 [#allocation3]
                %s1019 = scalar_lea.vmem %s929, %s1017
              $region69: #{critic_forward.1} parent=63 // loop_footer
                %s943 = sadd.s32 %s941, 1
              $region70: #{critic_forward.1} parent=63 // loop_footer_branch
                %940 = sbr.rel target = $region66
              $region71: #{critic_forward.1} parent=63 // loop_exit
                _
              %s1020 = sshrl.u32 %s925, 5
              %s1021 = sand.u32 %s925, 31
              %s1022 = smul.u32 %s1020, 32
              %s1023 = smul.u32 8, %s1022
              %s1024 = scalar_lea.vmem %s918, %s1023 [#allocation3]
              %s1025 = smul.u32 8, %s1022
              %s1026 = scalar_lea.vmem %s929, %s1025
              // While loop
              $region72: #{critic_forward.1} parent=63 // loop_pre_header
                _
              $region73: #{critic_forward.1} parent=63 // loop_header
                %s1028 = sphi 0, %s1030
                %p1029 = scmp.ge.s32.totalorder %s1028, %s1021
                %s1033 = sphi 0, %s1040
                %s1034 = sphi %s1024, %s1043
                %s1035 = sphi %s1026, %s1044
              $region74: #{critic_forward.1} parent=63 // loop_header_branch
                %1032 = sbr.rel (%p1029) target = $region78
              $region75: #{critic_forward.1} parent=63 // loop_body
                %v1036 = vld [vmem:[%s1034] sm:%s938]
                %1037 = vst [vmem:[%s1035] sm:%s938] %v1036
                %s1038 = sadd.s32 1, %s1033
                %p1039 = scmp.ge.s32.totalorder %s1038, %s1021
                %s1040 = scalar_select %p1039, 0, %s1038
                %s1041 = smul.u32 %s1040, 8
                %s1042 = smul.u32 %s1040, 8
                %s1043 = scalar_lea.vmem %s1024, %s1041 [#allocation3]
                %s1044 = scalar_lea.vmem %s1026, %s1042
              $region76: #{critic_forward.1} parent=63 // loop_footer
                %s1030 = sadd.s32 %s1028, 1
              $region77: #{critic_forward.1} parent=63 // loop_footer_branch
                %1027 = sbr.rel target = $region73
              $region78: #{critic_forward.1} parent=63 // loop_exit
                _
            $region64: #{critic_forward.1} parent=55 // pred_fallthru
              _
          $region56: #{critic_forward.1} parent=51 // pred_fallthru
            _
          %1155 = vnop
        $region52: #{critic_forward.1} parent=47 // pred_fallthru
          _
      $region48: #{critic_forward.1} parent=5 // pred_fallthru
        _
      %p1156 = scmp.le.s32.totalorder 2, %s14
      // Predicated region
      $region101: #{critic_forward.1} parent=5 // pred_check
        %p1157 = pneg %p1156
      $region102: #{critic_forward.1} parent=5 // pred_check_branch
        %1159 = sbr.rel (%p1157) target = $region104
      $region103: #{critic_forward.1} parent=5 // pred_region
        %s1160 = ssub.s32 %s14, 2
        // Predicated region
        $region105: #{critic_forward.1} parent=103 // pred_check
          %p1161 = pneg %p195
        $region106: #{critic_forward.1} parent=103 // pred_check_branch
          %1163 = sbr.rel (%p1161) target = $region108
        $region107: #{critic_forward.1} parent=103 // pred_region
          %s1164 = sand.u32 %s180, 1
          %s1165 = sand.u32 %s180, 1
          %s1166 = smul.addr %s1165, 256
          %s1167 = scalar_lea.vmem [#allocation3], %s1166
        $region108: #{critic_forward.1} parent=103 // pred_fallthru
          _
      $region104: #{critic_forward.1} parent=5 // pred_fallthru
        _
    $region6: #{critic_forward.1} parent=1 // loop_footer
      %s18 = sadd.s32 1, %s14
    $region7: #{critic_forward.1} parent=1 // loop_footer_branch
      %13 = sbr.rel target = $region3
    $region8: #{critic_forward.1} parent=1 // loop_exit
      _

</llo_original>
